<compile_context>
chip_gen: v7x
topology: tpu7x:2x2x1
jax: 0.10.0
libtpu: 0.0.40
codegen_flags: <defaults>
</compile_context>

<pallas_src>
import jax
import jax.numpy as jnp
from jax import lax
from jax.experimental import pallas as pl
from jax.experimental.pallas import tpu as pltpu


def _make_attention_kernel(q_ref, src_ref, w_ref, val_ref, attn_ref):
    q = q_ref[0]                 # (G, L)  f32, spatial-minor
    src = src_ref[0]             # (E, T)  f32
    w = w_ref[...]               # (G, E)  f32

    # conv1x1 on word features == matmul: (G, E) @ (E, T) -> (G, T)
    ws = jnp.dot(w, src, preferred_element_type=jnp.float32)

    # attention logits directly in the transposed (T, L) layout (lane-dense L):
    #   logits[t, l] = sum_g ws[g, t] * q[g, l]
    logits = lax.dot_general(ws, q, (((0,), (0,)), ((), ())),
                             preferred_element_type=jnp.float32)     # (T, L)

    # softmax over the word axis T  (== torch softmax over dim=2 of (B, L, T))
    m = jnp.max(logits, axis=0, keepdims=True)                       # (1, L)
    e = jnp.exp(logits - m)                                          # (T, L)
    s = jnp.sum(e, axis=0, keepdims=True)                            # (1, L)
    attn = e / s                                                     # (T, L)

    attn_ref[0] = attn
    # words_value: (G, T) @ (T, L) -> (G, L), lane-dense output
    val_ref[0] = jnp.dot(ws, attn, preferred_element_type=jnp.float32)


def make_attention_forward(img_query, words_source, words_conv_w):
    """
    img_query:    (B, G, H, W)
    words_source: (B, E, T)
    words_conv_w: (G, E, 1, 1)  (PyTorch conv1x1 weight, bias=False)
    returns: words_value (B, G, H, W), words_attn (B, T, H, W)
    """
    B, G, H, W = img_query.shape
    _, E, T = words_source.shape
    L = H * W

    # spatial-minor reshape is layout-free (no transpose)
    q = img_query.reshape(B, G, L).astype(jnp.float32)
    src = words_source.astype(jnp.float32)
    w = words_conv_w.reshape(G, E).astype(jnp.float32)

    val, attn = pl.pallas_call(
        _make_attention_kernel,
        out_shape=(
            jax.ShapeDtypeStruct((B, G, L), jnp.float32),
            jax.ShapeDtypeStruct((B, T, L), jnp.float32),
        ),
        grid_spec=pltpu.PrefetchScalarGridSpec(
            num_scalar_prefetch=0,
            grid=(B,),                         # parallel over batch (keeps v7x's 2 TCs busy)
            in_specs=[
                pl.BlockSpec((1, G, L), lambda b: (b, 0, 0)),
                pl.BlockSpec((1, E, T), lambda b: (b, 0, 0)),
                pl.BlockSpec((G, E), lambda b: (0, 0)),
            ],
            out_specs=[
                pl.BlockSpec((1, G, L), lambda b: (b, 0, 0)),
                pl.BlockSpec((1, T, L), lambda b: (b, 0, 0)),
            ],
        ),
        compiler_params=pltpu.CompilerParams(
            dimension_semantics=("parallel",)),
    )(q, src, w)

    return val.reshape(B, G, H, W), attn.reshape(B, T, H, W)


def make_attention_reference(img_query, words_source, words_conv_w):
    """Pure-JAX reference matching the PyTorch forward (mask=None)."""
    B, G, H, W = img_query.shape
    _, E, T = words_source.shape
    L = H * W
    w = words_conv_w.reshape(G, E)

    query = img_query.reshape(B, G, L)
    queryT = jnp.transpose(query, (0, 2, 1))                         # (B, L, G)
    ws = jnp.einsum('ge,bet->bgt', w, words_source)                  # (B, G, T)
    attn = jnp.einsum('blg,bgt->blt', queryT, ws)                    # (B, L, T)
    attn = jax.nn.softmax(attn, axis=2)
    attnT = jnp.transpose(attn, (0, 2, 1))                           # (B, T, L)
    value = jnp.einsum('bgt,btl->bgl', ws, attnT)                    # (B, G, L)
    return value.reshape(B, G, H, W), attnT.reshape(B, T, H, W)


if __name__ == "__main__":
    # small shapes consistent with the module: batch=2, G_hidden=32,
    # embedding_dim=16, spatial 16x16 (img_len=256), words_len=8
    B, G, E, T = 2, 32, 16, 8
    H = W = 16

    key = jax.random.PRNGKey(0)
    k1, k2, k3 = jax.random.split(key, 3)

    img_query = jax.random.normal(k1, (B, G, H, W), jnp.float32)
    words_source = jax.random.normal(k2, (B, E, T), jnp.float32)
    words_conv_w = 0.1 * jax.random.normal(k3, (G, E, 1, 1), jnp.float32)

    val, attn = make_attention_forward(img_query, words_source, words_conv_w)
    val, attn = jax.block_until_ready((val, attn))

    val_ref, attn_ref = make_attention_reference(img_query, words_source, words_conv_w)

    assert val.shape == (B, G, H, W) and attn.shape == (B, T, H, W)
    # attention rows must sum to 1 over the word axis
    assert jnp.allclose(jnp.sum(attn, axis=1), 1.0, atol=1e-5), "attn rows do not sum to 1"
    # exp() amplifies matmul rounding, so compare at 1e-3
    assert jnp.allclose(attn, attn_ref, atol=1e-3, rtol=1e-3), \
        f"attn max abs err = {float(jnp.max(jnp.abs(attn - attn_ref)))}"
    assert jnp.allclose(val, val_ref, atol=1e-3, rtol=1e-3), \
        f"value max abs err = {float(jnp.max(jnp.abs(val - val_ref)))}"

    print("KERNEL_OK")
</pallas_src>

<mosaic_0001>
module attributes {stable_mosaic.version = 11 : i64} {
  func.func @_make_attention_kernel(%arg0: i32, %arg1: memref<1x32x256xf32, #tpu.memory_space<vmem>>, %arg2: memref<1x16x8xf32, #tpu.memory_space<vmem>>, %arg3: memref<32x16xf32, #tpu.memory_space<vmem>>, %arg4: memref<1x32x256xf32, #tpu.memory_space<vmem>>, %arg5: memref<1x8x256xf32, #tpu.memory_space<vmem>>) attributes {dimension_semantics = [#tpu.dimension_semantics<parallel>], iteration_bounds = array<i64: 2>, scalar_prefetch = 0 : i64, scratch_operands = 0 : i64, tpu.core_type = #tpu.core_type<tc>, window_params = [{transform_indices = @transform_0, window_bounds = array<i64: 1, 32, 256>}, {transform_indices = @transform_1, window_bounds = array<i64: 1, 16, 8>}, {pipeline_mode = #tpu.pipeline_mode<synchronous>, transform_indices = @transform_2, window_bounds = array<i64: 32, 16>}, {transform_indices = @transform_3, window_bounds = array<i64: 1, 32, 256>}, {transform_indices = @transform_4, window_bounds = array<i64: 1, 8, 256>}]} {
    %c0 = arith.constant 0 : index
    %c0_0 = arith.constant 0 : index
    %c0_1 = arith.constant 0 : index
    %0 = vector.load %arg1[%c0, %c0_0, %c0_1] : memref<1x32x256xf32, #tpu.memory_space<vmem>>, vector<1x32x256xf32>
    %1 = vector.shape_cast %0 : vector<1x32x256xf32> to vector<32x256xf32>
    %c0_2 = arith.constant 0 : index
    %c0_3 = arith.constant 0 : index
    %c0_4 = arith.constant 0 : index
    %2 = vector.load %arg2[%c0_2, %c0_3, %c0_4] : memref<1x16x8xf32, #tpu.memory_space<vmem>>, vector<1x16x8xf32>
    %3 = vector.shape_cast %2 : vector<1x16x8xf32> to vector<16x8xf32>
    %c0_5 = arith.constant 0 : index
    %c0_6 = arith.constant 0 : index
    %4 = vector.load %arg3[%c0_5, %c0_6] : memref<32x16xf32, #tpu.memory_space<vmem>>, vector<32x16xf32>
    %cst = arith.constant dense<0.000000e+00> : vector<32x8xf32>
    %5 = tpu.matmul %4, %3, %cst {dimension_numbers = #tpu.dot_dimension_numbers<[1], [0], [0], [1], [0, 0, 1, 1], [], []>} : vector<32x16xf32>, vector<16x8xf32>, vector<32x8xf32> -> vector<32x8xf32>
    %cst_7 = arith.constant dense<0.000000e+00> : vector<8x256xf32>
    %6 = tpu.matmul %5, %1, %cst_7 {dimension_numbers = #tpu.dot_dimension_numbers<[0], [0], [1], [1], [0, 1, 1, 1], [], []>} : vector<32x8xf32>, vector<32x256xf32>, vector<8x256xf32> -> vector<8x256xf32>
    %cst_8 = arith.constant dense<0xFF800000> : vector<256xf32>
    %7 = vector.multi_reduction <maximumf>, %6, %cst_8 [0] : vector<8x256xf32> to vector<256xf32>
    %8 = vector.shape_cast %7 : vector<256xf32> to vector<1x256xf32>
    %9 = vector.broadcast %8 : vector<1x256xf32> to vector<8x256xf32>
    %10 = arith.subf %6, %9 : vector<8x256xf32>
    %11 = math.exp %10 : vector<8x256xf32>
    %cst_9 = arith.constant dense<0.000000e+00> : vector<256xf32>
    %12 = vector.multi_reduction <add>, %11, %cst_9 [0] : vector<8x256xf32> to vector<256xf32>
    %13 = vector.shape_cast %12 : vector<256xf32> to vector<1x256xf32>
    %14 = vector.broadcast %13 : vector<1x256xf32> to vector<8x256xf32>
    %15 = arith.divf %11, %14 : vector<8x256xf32>
    %c0_10 = arith.constant 0 : index
    %c0_11 = arith.constant 0 : index
    %c0_12 = arith.constant 0 : index
    %16 = vector.load %arg5[%c0_10, %c0_11, %c0_12] : memref<1x8x256xf32, #tpu.memory_space<vmem>>, vector<1x8x256xf32>
    %17 = vector.shape_cast %16 : vector<1x8x256xf32> to vector<8x256xf32>
    %18 = vector.shape_cast %15 : vector<8x256xf32> to vector<1x8x256xf32>
    tpu.vector_store %arg5[%c0_10, %c0_11, %c0_12], %18 {strides = array<i32>} : memref<1x8x256xf32, #tpu.memory_space<vmem>>, vector<1x8x256xf32>,
    %cst_13 = arith.constant dense<0.000000e+00> : vector<32x256xf32>
    %19 = tpu.matmul %5, %15, %cst_13 {dimension_numbers = #tpu.dot_dimension_numbers<[1], [0], [0], [1], [0, 0, 1, 1], [], []>} : vector<32x8xf32>, vector<8x256xf32>, vector<32x256xf32> -> vector<32x256xf32>
    %c0_14 = arith.constant 0 : index
    %c0_15 = arith.constant 0 : index
    %c0_16 = arith.constant 0 : index
    %20 = vector.load %arg4[%c0_14, %c0_15, %c0_16] : memref<1x32x256xf32, #tpu.memory_space<vmem>>, vector<1x32x256xf32>
    %21 = vector.shape_cast %20 : vector<1x32x256xf32> to vector<32x256xf32>
    %22 = vector.shape_cast %19 : vector<32x256xf32> to vector<1x32x256xf32>
    tpu.vector_store %arg4[%c0_14, %c0_15, %c0_16], %22 {strides = array<i32>} : memref<1x32x256xf32, #tpu.memory_space<vmem>>, vector<1x32x256xf32>,
    return
  }
  func.func @transform_0(%arg0: i32) -> (i32, i32, i32) {
    %c0_i32 = arith.constant 0 : i32
    %c0_i32_0 = arith.constant 0 : i32
    %c0_i32_1 = arith.constant 0 : i32
    return %arg0, %c0_i32, %c0_i32_0 : i32, i32, i32
  }
  func.func @transform_1(%arg0: i32) -> (i32, i32, i32) {
    %c0_i32 = arith.constant 0 : i32
    %c0_i32_0 = arith.constant 0 : i32
    %c0_i32_1 = arith.constant 0 : i32
    return %arg0, %c0_i32, %c0_i32_0 : i32, i32, i32
  }
  func.func @transform_2(%arg0: i32) -> (i32, i32) {
    %c0_i32 = arith.constant 0 : i32
    %c0_i32_0 = arith.constant 0 : i32
    %c0_i32_1 = arith.constant 0 : i32
    return %c0_i32, %c0_i32_0 : i32, i32
  }
  func.func @transform_3(%arg0: i32) -> (i32, i32, i32) {
    %c0_i32 = arith.constant 0 : i32
    %c0_i32_0 = arith.constant 0 : i32
    %c0_i32_1 = arith.constant 0 : i32
    return %arg0, %c0_i32, %c0_i32_0 : i32, i32, i32
  }
  func.func @transform_4(%arg0: i32) -> (i32, i32, i32) {
    %c0_i32 = arith.constant 0 : i32
    %c0_i32_0 = arith.constant 0 : i32
    %c0_i32_1 = arith.constant 0 : i32
    return %arg0, %c0_i32, %c0_i32_0 : i32, i32, i32
  }
}

</mosaic_0001>

<llo_original>
// kernel: tpu_custom_call.1
$region0: #{tpu_custom_call.1}
  #allocation0 [shape = 'u32[]', space=smem, size = 0x4, offset = 0x4, fixed_abs, tag = 'smem constant byte address 0x4 - core index']
  #allocation1 [shape = 'u32[144,128]{1,0:T(1,128)}', space=vmem, size = 0x12000, scoped, tag = 'internal scratch']
  %s0 = inlined_call_operand.hbm [shape: f32[2,32,256], index: 0, kind: input, shape index: {}]
  %s1 = inlined_call_operand.vmem [shape: f32[2,16,8], index: 1, kind: input, shape index: {}]
  %s2 = inlined_call_operand.vmem [shape: f32[32,16], index: 2, kind: input, shape index: {}]
  %s3 = inlined_call_operand.hbm [shape: f32[2,32,256], index: 3, kind: output, shape index: {0}]
  %s4 = inlined_call_operand.hbm [shape: f32[2,8,256], index: 4, kind: output, shape index: {1}]
  %5 = xla_tuple %s3, %s4
  %s6 = sld [smem:[#allocation0]]
  $region57: #{tpu_custom_call.1} parent=0
    _
  %s8 = ssub.s32 1, %s6
  %s9 = scalar_select 0, %s8, %s6
  $region1: #{tpu_custom_call.1} parent=0
    #allocation2 [shape = 'u8[65536]{0}', space=vmem, size = 0x10000, scoped, tag = 'input window, operand 0']
    #allocation3 [shape = 's32[2]{0}', space=sflag, size = 0x8, scoped, tag = 'scoped memory for tpu_custom_call.1']
    #allocation4 [shape = 's32[2]{0}', space=sflag, size = 0x8, scoped, tag = 'scoped memory for tpu_custom_call.1']
    #allocation5 [shape = 'u8[65536]{0}', space=vmem, size = 0x10000, scoped, tag = 'output window, operand 0']
    #allocation6 [shape = 'u8[16384]{0}', space=vmem, size = 0x4000, scoped, tag = 'output window, operand 1']
    #allocation7 [shape = 's32[2]{0}', space=sflag, size = 0x8, scoped, tag = 'scoped memory for tpu_custom_call.1']
    %10 = vsyncpa [#allocation3], 0
    %s11 = scalar_lea.sflag [#allocation3], 1
    %12 = vsyncpa %s11, 0
    %13 = vsyncpa [#allocation4], 0
    %s14 = scalar_lea.sflag [#allocation4], 1
    %15 = vsyncpa %s14, 0
    %16 = vsyncpa [#allocation7], 0
    %s17 = scalar_lea.sflag [#allocation7], 1
    %18 = vsyncpa %s17, 0
    loop: start=0, step=1, limit=4
    $region2: #{tpu_custom_call.1} parent=1 // loop_pre_header
      _
    $region3: #{tpu_custom_call.1} parent=1 // loop_header
      %s20 = sphi 0, %s24
      %p21 = scmp.ge.s32.totalorder %s20, 4
      %s30 = sphi 0, %s32
      %s33 = sphi 0, %s30
      %s34 = sphi 0, %s33
      %s50 = sphi 0, %s34
      %s56 = sphi 0, %s58
      %s59 = sphi 0, %s56
      %s60 = sphi 0, %s59
      %s76 = sphi 0, %s60
      %s80 = sphi 0, %s80
      %s82 = sphi 0, %s80
      %s83 = sphi 0, %s82
      %s97 = sphi 0, %s83
      %s103 = sphi 0, %s105
      %s106 = sphi 0, %s103
      %s107 = sphi 0, %s106
      %s123 = sphi 0, %s107
      %s129 = sphi 0, %s131
      %s132 = sphi 0, %s129
      %s133 = sphi 0, %s132
      %s149 = sphi 0, %s133
    $region4: #{tpu_custom_call.1} parent=1 // loop_header_branch
      %23 = sbr.rel (%p21) target = $region8
    $region5: #{tpu_custom_call.1} parent=1 // loop_body
      %s25 = ssub.s32 %s20, 1
      %s26 = ssub.s32 %s20, 2
      %s27 = sadd.s32 %s20, 1
      %s28 = ssub.s32 %s20, %s27
      %p29 = scmp.eq.s32.totalorder %s28, 0
      %s31 = sadd.s32 %s30, 1
      %s32 = scalar_select %p29, %s30, %s31
      %p35 = pneg %p29
      %p36 = scmp.eq.s32.totalorder %s20, 1
      %p37 = por %p35, %p36
      %p38 = scmp.ne.s32.totalorder %s30, %s33
      %p39 = scmp.eq.s32.totalorder %s20, 0
      %p40 = por %p38, %p39
      %p41 = scmp.ne.s32.totalorder %s30, %s33
      %p42 = scmp.eq.s32.totalorder %s25, 1
      %p43 = por %p41, %p42
      %p44 = scmp.ne.s32.totalorder %s33, %s34
      %p45 = scmp.eq.s32.totalorder %s25, 0
      %p46 = por %p44, %p45
      %p47 = scmp.ne.s32.totalorder %s33, %s34
      %p48 = scmp.eq.s32.totalorder %s26, 1
      %p49 = por %p47, %p48
      %p51 = scmp.ne.s32.totalorder %s34, %s50
      %p52 = scmp.eq.s32.totalorder %s26, 0
      %p53 = por %p51, %p52
      %s54 = ssub.s32 %s20, %s27
      %p55 = scmp.eq.s32.totalorder %s54, 0
      %s57 = sadd.s32 %s56, 1
      %s58 = scalar_select %p55, %s56, %s57
      %p61 = pneg %p55
      %p62 = scmp.eq.s32.totalorder %s20, 1
      %p63 = por %p61, %p62
      %p64 = scmp.ne.s32.totalorder %s56, %s59
      %p65 = scmp.eq.s32.totalorder %s20, 0
      %p66 = por %p64, %p65
      %p67 = scmp.ne.s32.totalorder %s56, %s59
      %p68 = scmp.eq.s32.totalorder %s25, 1
      %p69 = por %p67, %p68
      %p70 = scmp.ne.s32.totalorder %s59, %s60
      %p71 = scmp.eq.s32.totalorder %s25, 0
      %p72 = por %p70, %p71
      %p73 = scmp.ne.s32.totalorder %s59, %s60
      %p74 = scmp.eq.s32.totalorder %s26, 1
      %p75 = por %p73, %p74
      %p77 = scmp.ne.s32.totalorder %s60, %s76
      %p78 = scmp.eq.s32.totalorder %s26, 0
      %p79 = por %p77, %p78
      %s81 = sadd.s32 %s80, 1
      %p84 = scmp.eq.s32.totalorder %s20, 1
      %p85 = scmp.ne.s32.totalorder %s80, %s82
      %p86 = scmp.eq.s32.totalorder %s20, 0
      %p87 = por %p85, %p86
      %p88 = scmp.ne.s32.totalorder %s80, %s82
      %p89 = scmp.eq.s32.totalorder %s25, 1
      %p90 = por %p88, %p89
      %p91 = scmp.ne.s32.totalorder %s82, %s83
      %p92 = scmp.eq.s32.totalorder %s25, 0
      %p93 = por %p91, %p92
      %p94 = scmp.ne.s32.totalorder %s82, %s83
      %p95 = scmp.eq.s32.totalorder %s26, 1
      %p96 = por %p94, %p95
      %p98 = scmp.ne.s32.totalorder %s83, %s97
      %p99 = scmp.eq.s32.totalorder %s26, 0
      %p100 = por %p98, %p99
      %s101 = ssub.s32 %s20, %s27
      %p102 = scmp.eq.s32.totalorder %s101, 0
      %s104 = sadd.s32 %s103, 1
      %s105 = scalar_select %p102, %s103, %s104
      %p108 = pneg %p102
      %p109 = scmp.eq.s32.totalorder %s20, 1
      %p110 = por %p108, %p109
      %p111 = scmp.ne.s32.totalorder %s103, %s106
      %p112 = scmp.eq.s32.totalorder %s20, 0
      %p113 = por %p111, %p112
      %p114 = scmp.ne.s32.totalorder %s103, %s106
      %p115 = scmp.eq.s32.totalorder %s25, 1
      %p116 = por %p114, %p115
      %p117 = scmp.ne.s32.totalorder %s106, %s107
      %p118 = scmp.eq.s32.totalorder %s25, 0
      %p119 = por %p117, %p118
      %p120 = scmp.ne.s32.totalorder %s106, %s107
      %p121 = scmp.eq.s32.totalorder %s26, 1
      %p122 = por %p120, %p121
      %p124 = scmp.ne.s32.totalorder %s107, %s123
      %p125 = scmp.eq.s32.totalorder %s26, 0
      %p126 = por %p124, %p125
      %s127 = ssub.s32 %s20, %s27
      %p128 = scmp.eq.s32.totalorder %s127, 0
      %s130 = sadd.s32 %s129, 1
      %s131 = scalar_select %p128, %s129, %s130
      %p134 = pneg %p128
      %p135 = scmp.eq.s32.totalorder %s20, 1
      %p136 = por %p134, %p135
      %p137 = scmp.ne.s32.totalorder %s129, %s132
      %p138 = scmp.eq.s32.totalorder %s20, 0
      %p139 = por %p137, %p138
      %p140 = scmp.ne.s32.totalorder %s129, %s132
      %p141 = scmp.eq.s32.totalorder %s25, 1
      %p142 = por %p140, %p141
      %p143 = scmp.ne.s32.totalorder %s132, %s133
      %p144 = scmp.eq.s32.totalorder %s25, 0
      %p145 = por %p143, %p144
      %p146 = scmp.ne.s32.totalorder %s132, %s133
      %p147 = scmp.eq.s32.totalorder %s26, 1
      %p148 = por %p146, %p147
      %p150 = scmp.ne.s32.totalorder %s133, %s149
      %p151 = scmp.eq.s32.totalorder %s26, 0
      %p152 = por %p150, %p151
      %p153 = scmp.le.s32.totalorder 1, %s20
      %p154 = scmp.lt.s32.totalorder %s20, 3
      %p155 = pnand %p153, %p154
      %p156 = pneg %p155
      // Predicated region
      $region9: #{tpu_custom_call.1} parent=5 // pred_check
        _
      $region10: #{tpu_custom_call.1} parent=5 // pred_check_branch
        %158 = sbr.rel (%p155) target = $region12
      $region11: #{tpu_custom_call.1} parent=5 // pred_region
        %s159 = ssub.s32 %s20, 1
        // Predicated region
        $region13: #{tpu_custom_call.1} parent=11 // pred_check
          %p160 = pneg %p93
        $region14: #{tpu_custom_call.1} parent=11 // pred_check_branch
          %162 = sbr.rel (%p160) target = $region16
        $region15: #{tpu_custom_call.1} parent=11 // pred_region
          _
        $region16: #{tpu_custom_call.1} parent=11 // pred_fallthru
          _
      $region12: #{tpu_custom_call.1} parent=5 // pred_fallthru
        _
      %p163 = scmp.lt.s32.totalorder %s20, 2
      // Predicated region
      $region17: #{tpu_custom_call.1} parent=5 // pred_check
        %p164 = pneg %p163
      $region18: #{tpu_custom_call.1} parent=5 // pred_check_branch
        %166 = sbr.rel (%p164) target = $region20
      $region19: #{tpu_custom_call.1} parent=5 // pred_region
        // Predicated region
        $region21: #{tpu_custom_call.1} parent=19 // pred_check
          %p167 = pneg %p40
        $region22: #{tpu_custom_call.1} parent=19 // pred_check_branch
          %169 = sbr.rel (%p167) target = $region24
        $region23: #{tpu_custom_call.1} parent=19 // pred_region
          %s170 = sand.u32 %s30, 1
          %s171 = scalar_lea.sflag [#allocation3], %s170
          %s172 = sand.u32 %s30, 1
          %s173 = smul.addr %s172, 64
          %s174 = scalar_lea.vmem [#allocation2], %s173
          %s176 = ssub.s32 1024, 1024
          %177 = vsyncadd %s171, %s176
          %s178 = smul.addr %s20, 8
          %s179 = smul.addr %s178, 128
          %s180 = scalar_lea.hbm %s0, %s179
          %s181 = sshll.u32 %s174, 4
          %s182 = int_to_ptr.vmem [resolvable:$true] %s181
          %187 = dma.hbm_to_vmem [thread:$0]  %s180, 1024, %s182, %s171, 256, 256, 16
        $region24: #{tpu_custom_call.1} parent=19 // pred_fallthru
          _
        // Predicated region
        $region25: #{tpu_custom_call.1} parent=19 // pred_check
          %p188 = pneg %p66
        $region26: #{tpu_custom_call.1} parent=19 // pred_check_branch
          %190 = sbr.rel (%p188) target = $region28
        $region27: #{tpu_custom_call.1} parent=19 // pred_region
          %p191 = scmp.lt.s32.totalorder %s20, 1
          %s192 = scalar_select %p191, %s20, 1
          %s193 = smul.addr %s192, 2
          %s194 = smul.addr %s193, 8
          %s195 = scalar_lea.vmem %s1, %s194
        $region28: #{tpu_custom_call.1} parent=19 // pred_fallthru
          _
      $region20: #{tpu_custom_call.1} parent=5 // pred_fallthru
        _
      %p196 = scmp.le.s32.totalorder 1, %s20
      %p197 = scmp.lt.s32.totalorder %s20, 3
      %p198 = pnand %p196, %p197
      %p199 = pneg %p198
      // Predicated region
      $region29: #{tpu_custom_call.1} parent=5 // pred_check
        _
      $region30: #{tpu_custom_call.1} parent=5 // pred_check_branch
        %201 = sbr.rel (%p198) target = $region32
      $region31: #{tpu_custom_call.1} parent=5 // pred_region
        %s202 = ssub.s32 %s20, 1
        %s203 = sand.u32 %s33, 1
        %s204 = scalar_lea.sflag [#allocation3], %s203
        %s205 = sand.u32 %s33, 1
        %s206 = smul.addr %s205, 64
        %s207 = scalar_lea.vmem [#allocation2], %s206
        // Predicated region
        $region33: #{tpu_custom_call.1} parent=31 // pred_check
          %p208 = pneg %p46
        $region34: #{tpu_custom_call.1} parent=31 // pred_check_branch
          %210 = sbr.rel (%p208) target = $region36
        $region35: #{tpu_custom_call.1} parent=31 // pred_region
          %211 = dma.done %s204, 1024
        $region36: #{tpu_custom_call.1} parent=31 // pred_fallthru
          _
        %s212 = sand.u32 %s33, 1
        %s213 = scalar_lea.sflag [#allocation3], %s212
        %s214 = sand.u32 %s33, 1
        %s215 = smul.addr %s214, 64
        %s216 = scalar_lea.vmem [#allocation2], %s215
        %p217 = pneg %p46
        %p218 = pneg %p43
        %p219 = scmp.lt.s32.totalorder %s25, 1
        %s220 = scalar_select %p219, %s25, 1
        %s221 = smul.addr %s220, 2
        %s222 = smul.addr %s221, 8
        %s223 = scalar_lea.vmem %s1, %s222
        %p224 = pneg %p72
        %p225 = pneg %p69
        %p226 = pneg %p93
        %p227 = pneg %p90
        %p228 = pneg %p119
        %p229 = pneg %p116
        %s230 = sand.u32 %s106, 1
        %s231 = scalar_lea.sflag [#allocation4], %s230
        %s232 = sand.u32 %s106, 1
        %s233 = smul.addr %s232, 64
        %s234 = scalar_lea.vmem [#allocation5], %s233
        %p235 = pneg %p145
        %p236 = pneg %p142
        %s237 = sand.u32 %s132, 1
        %s238 = scalar_lea.sflag [#allocation7], %s237
        %s239 = sand.u32 %s132, 1
        %s240 = smul.addr %s239, 16
        %s241 = scalar_lea.vmem [#allocation6], %s240
        %p242 = scmp.lt.s32.totalorder %s25, 1
        %s243 = scalar_select %p242, %s25, 1
        %s244 = smul.addr %s243, 2
        %s245 = smul.addr %s244, 8
        %s246 = scalar_lea.vmem %s1, %s245
        %v247 = vld [vmem:[%s207] sm:$0xff]
        %v248 = vld [vmem:[%s207 + $0x8] sm:$0xff]
        %v249 = vld [vmem:[%s207 + $0x10] sm:$0xff]
        %v250 = vld [vmem:[%s207 + $0x18] sm:$0xff]
        %v251 = vld [vmem:[%s207 + $0x20] sm:$0xff]
        %v252 = vld [vmem:[%s207 + $0x28] sm:$0xff]
        %v253 = vld [vmem:[%s207 + $0x30] sm:$0xff]
        %v254 = vld [vmem:[%s207 + $0x38] sm:$0xff]
        %v255 = vld [vmem:[%s246] sm:$0xff]
        %v256 = vld [vmem:[%s246 + $0x8] sm:$0xff]
        %v257 = vld [vmem:[%s2] sm:$0xff]
        %v258 = vld [vmem:[%s2 + $0x8] sm:$0xff]
        %v259 = vld [vmem:[%s2 + $0x10] sm:$0xff]
        %v260 = vld [vmem:[%s2 + $0x18] sm:$0xff]
        %vm261 = vcmask 130048
        %v263 = vsel %vm261, %v257, 0
        %v266 = vsel %vm261, %v258, 0
        %v269 = vsel %vm261, %v259, 0
        %v272 = vsel %vm261, %v260, 0
        %274 = vmatprep.subr.mxu0 0.0
        %275 = vmatpush1.msra.mxu0 %v255
        %276 = vmatprep.subr.mxu0 0.0
        %277 = vmatpush1.msra.mxu0 %v256
        %278 = vmatprep.subr.mxu0 0.0
        %279 = vmatpush1.msra.mxu0 0.0
        %280 = vmatprep.subr.mxu0 0.0
        %281 = vmatpush1.msra.mxu0 0.0
        %282 = vmatprep.subr.mxu0 0.0
        %283 = vmatpush1.msra.mxu0 0.0
        %284 = vmatprep.subr.mxu0 0.0
        %285 = vmatpush1.msra.mxu0 0.0
        %286 = vmatprep.subr.mxu0 0.0
        %287 = vmatpush1.msra.mxu0 0.0
        %288 = vmatprep.subr.mxu0 0.0
        %289 = vmatpush1.msra.mxu0 0.0
        %290 = vmatprep.subr.mxu0 0.0
        %291 = vmatpush1.msra.mxu0 0.0
        %292 = vmatprep.subr.mxu0 0.0
        %293 = vmatpush1.msra.mxu0 0.0
        %294 = vmatprep.subr.mxu0 0.0
        %295 = vmatpush1.msra.mxu0 0.0
        %296 = vmatprep.subr.mxu0 0.0
        %297 = vmatpush1.msra.mxu0 0.0
        %298 = vmatprep.subr.mxu0 0.0
        %299 = vmatpush1.msra.mxu0 0.0
        %300 = vmatprep.subr.mxu0 0.0
        %301 = vmatpush1.msra.mxu0 0.0
        %302 = vmatprep.subr.mxu0 0.0
        %303 = vmatpush1.msra.mxu0 0.0
        %304 = vmatprep.subr.mxu0 0.0
        %305 = vmatpush1.msra.mxu0 0.0
        %306 = vmatprep.subr.mxu0 0.0
        %307 = vmatpush1.msra.mxu0 0.0
        %308 = vmatprep.subr.mxu0 0.0
        %309 = vmatpush1.msra.mxu0 0.0
        %310 = vmatprep.subr.mxu0 0.0
        %311 = vmatpush1.msra.mxu0 0.0
        %312 = vmatprep.subr.mxu0 0.0
        %313 = vmatpush1.msra.mxu0 0.0
        %314 = vmatprep.subr.mxu0 0.0
        %315 = vmatpush1.msra.mxu0 0.0
        %316 = vmatprep.subr.mxu0 0.0
        %317 = vmatpush1.msra.mxu0 0.0
        %318 = vmatprep.subr.mxu0 0.0
        %319 = vmatpush1.msra.mxu0 0.0
        %320 = vmatprep.subr.mxu0 0.0
        %321 = vmatpush1.msra.mxu0 0.0
        %322 = vmatprep.subr.mxu0 0.0
        %323 = vmatpush1.msra.mxu0 0.0
        %324 = vmatprep.subr.mxu0 0.0
        %325 = vmatpush1.msra.mxu0 0.0
        %326 = vmatprep.subr.mxu0 0.0
        %327 = vmatpush1.msra.mxu0 0.0
        %328 = vmatprep.subr.mxu0 0.0
        %329 = vmatpush1.msra.mxu0 0.0
        %330 = vmatprep.subr.mxu0 0.0
        %331 = vmatpush1.msra.mxu0 0.0
        %332 = vmatprep.subr.mxu0 0.0
        %333 = vmatpush1.msra.mxu0 0.0
        %334 = vmatprep.subr.mxu0 0.0
        %335 = vmatpush1.msra.mxu0 0.0
        %336 = vmatprep.subr.mxu0 0.0
        %337 = vmatpush1.msra.mxu0 0.0
        %338 = vmatprep.mubr.f32.mxu0 0.0
        %339 = vmatmul.mubr.f32.gmra.mrb[0].mxu0 %v263
        %v340 = vpop.f32.mrb[0].mxu0
        %v341 = vadd.f32 0.0, %v340
        %v342 = vpop.f32.mrb[0].mxu0
        %343 = vmatprep.mubr.f32.mxu0 0.0
        %344 = vmatmul.mubr.f32.gmra.mrb[0].mxu0 %v266
        %v345 = vpop.f32.mrb[0].mxu0
        %v346 = vadd.f32 0.0, %v345
        %v347 = vpop.f32.mrb[0].mxu0
        %348 = vmatprep.mubr.f32.mxu0 0.0
        %349 = vmatmul.mubr.f32.gmra.mrb[0].mxu0 %v269
        %v350 = vpop.f32.mrb[0].mxu0
        %v351 = vadd.f32 0.0, %v350
        %v352 = vpop.f32.mrb[0].mxu0
        %353 = vmatprep.mubr.f32.mxu0 0.0
        %354 = vmatmul.mubr.f32.gmra.mrb[0].mxu0 %v272
        %v355 = vpop.f32.mrb[0].mxu0
        %v356 = vadd.f32 0.0, %v355
        %v357 = vpop.f32.mrb[0].mxu0
        %358 = vdwg.mxu0
        %359 = vxpose.xlu0.b32.start [1/16] %v341, 128
        %360 = vxpose.xlu0.b32.cont [2/16] %v346, 128
        %361 = vxpose.xlu0.b32.cont [3/16] %v351, 128
        %362 = vxpose.xlu0.b32.cont [4/16] %v356, 128
        %363 = vxpose.xlu0.b32.cont [5/16] 0.0, 128
        %364 = vxpose.xlu0.b32.cont [6/16] 0.0, 128
        %365 = vxpose.xlu0.b32.cont [7/16] 0.0, 128
        %366 = vxpose.xlu0.b32.cont [8/16] 0.0, 128
        %367 = vxpose.xlu0.b32.cont [9/16] 0.0, 128
        %368 = vxpose.xlu0.b32.cont [10/16] 0.0, 128
        %369 = vxpose.xlu0.b32.cont [11/16] 0.0, 128
        %370 = vxpose.xlu0.b32.cont [12/16] 0.0, 128
        %371 = vxpose.xlu0.b32.cont [13/16] 0.0, 128
        %372 = vxpose.xlu0.b32.cont [14/16] 0.0, 128
        %373 = vxpose.xlu0.b32.cont [15/16] 0.0, 128
        %374 = vxpose.xlu0.b32.end [16/16] 0.0, 128
        %v375 = vpop.trf.xlu0
        %v376 = vpop.trf.xlu0
        %v377 = vpop.trf.xlu0
        %v378 = vpop.trf.xlu0
        %v379 = vpop.trf.xlu0
        %v380 = vpop.trf.xlu0
        %v381 = vpop.trf.xlu0
        %v382 = vpop.trf.xlu0
        %v383 = vpop.trf.xlu0
        %v384 = vpop.trf.xlu0
        %v385 = vpop.trf.xlu0
        %v386 = vpop.trf.xlu0
        %v387 = vpop.trf.xlu0
        %v388 = vpop.trf.xlu0
        %v389 = vpop.trf.xlu0
        %v390 = vpop.trf.xlu0
        %vm391 = vcmask 261120
        %v393 = vsel %vm391, %v375, 0
        %395 = vmatprep.subr.mxu0 %v248
        %396 = vmatpush1.msra.mxu0 %v247
        %397 = vmatprep.subr.mxu0 %v250
        %398 = vmatpush1.msra.mxu0 %v249
        %399 = vmatprep.subr.mxu0 %v252
        %400 = vmatpush1.msra.mxu0 %v251
        %401 = vmatprep.subr.mxu0 %v254
        %402 = vmatpush1.msra.mxu0 %v253
        %403 = vmatprep.subr.mxu0 0.0
        %404 = vmatpush1.msra.mxu0 0.0
        %405 = vmatprep.subr.mxu0 0.0
        %406 = vmatpush1.msra.mxu0 0.0
        %407 = vmatprep.subr.mxu0 0.0
        %408 = vmatpush1.msra.mxu0 0.0
        %409 = vmatprep.subr.mxu0 0.0
        %410 = vmatpush1.msra.mxu0 0.0
        %411 = vmatprep.subr.mxu0 0.0
        %412 = vmatpush1.msra.mxu0 0.0
        %413 = vmatprep.subr.mxu0 0.0
        %414 = vmatpush1.msra.mxu0 0.0
        %415 = vmatprep.subr.mxu0 0.0
        %416 = vmatpush1.msra.mxu0 0.0
        %417 = vmatprep.subr.mxu0 0.0
        %418 = vmatpush1.msra.mxu0 0.0
        %419 = vmatprep.subr.mxu0 0.0
        %420 = vmatpush1.msra.mxu0 0.0
        %421 = vmatprep.subr.mxu0 0.0
        %422 = vmatpush1.msra.mxu0 0.0
        %423 = vmatprep.subr.mxu0 0.0
        %424 = vmatpush1.msra.mxu0 0.0
        %425 = vmatprep.subr.mxu0 0.0
        %426 = vmatpush1.msra.mxu0 0.0
        %427 = vmatprep.subr.mxu0 0.0
        %428 = vmatpush1.msra.mxu0 0.0
        %429 = vmatprep.subr.mxu0 0.0
        %430 = vmatpush1.msra.mxu0 0.0
        %431 = vmatprep.subr.mxu0 0.0
        %432 = vmatpush1.msra.mxu0 0.0
        %433 = vmatprep.subr.mxu0 0.0
        %434 = vmatpush1.msra.mxu0 0.0
        %435 = vmatprep.subr.mxu0 0.0
        %436 = vmatpush1.msra.mxu0 0.0
        %437 = vmatprep.subr.mxu0 0.0
        %438 = vmatpush1.msra.mxu0 0.0
        %439 = vmatprep.subr.mxu0 0.0
        %440 = vmatpush1.msra.mxu0 0.0
        %441 = vmatprep.subr.mxu0 0.0
        %442 = vmatpush1.msra.mxu0 0.0
        %443 = vmatprep.subr.mxu0 0.0
        %444 = vmatpush1.msra.mxu0 0.0
        %445 = vmatprep.subr.mxu0 0.0
        %446 = vmatpush1.msra.mxu0 0.0
        %447 = vmatprep.subr.mxu0 0.0
        %448 = vmatpush1.msra.mxu0 0.0
        %449 = vmatprep.subr.mxu0 0.0
        %450 = vmatpush1.msra.mxu0 0.0
        %451 = vmatprep.subr.mxu0 0.0
        %452 = vmatpush1.msra.mxu0 0.0
        %453 = vmatprep.subr.mxu0 0.0
        %454 = vmatpush1.msra.mxu0 0.0
        %455 = vmatprep.subr.mxu0 0.0
        %456 = vmatpush1.msra.mxu0 0.0
        %457 = vmatprep.subr.mxu0 0.0
        %458 = vmatpush1.msra.mxu0 0.0
        %459 = vmatprep.mubr.f32.mxu0 0.0
        %460 = vmatmul.mubr.f32.gmra.mrb[0].mxu0 %v393
        %v461 = vpop.f32.mrb[0].mxu0
        %v462 = vadd.f32 0.0, %v461
        %v463 = vpop.f32.mrb[0].mxu0
        %v464 = vadd.f32 0.0, %v463
        %465 = vdwg.mxu0
        %v466 = vrot.slane %v462, 4
        %v467 = vmax.f32 %v462, %v466
        %v468 = vrot.slane %v467, 2
        %v469 = vmax.f32 %v467, %v468
        %v470 = vrot.slane %v469, 1
        %v471 = vmax.f32 %v469, %v470
        %v472 = vrot.slane %v464, 4
        %v473 = vmax.f32 %v464, %v472
        %v474 = vrot.slane %v473, 2
        %v475 = vmax.f32 %v473, %v474
        %v476 = vrot.slane %v475, 1
        %v477 = vmax.f32 %v475, %v476
        %v478 = vsub.f32 %v462, %v471
        %v479 = vsub.f32 %v464, %v477
        %v480 = vmul.f32 %v478, 1.442695
        %v481 = vpow.pop %v480
        %v482 = vmul.f32 %v479, 1.442695
        %v483 = vpow.pop %v482
        %v484 = vrot.slane %v481, 4
        %v485 = vadd.f32 %v481, %v484
        %v486 = vrot.slane %v485, 2
        %v487 = vadd.f32 %v485, %v486
        %v488 = vrot.slane %v487, 1
        %v489 = vadd.f32 %v487, %v488
        %v490 = vrot.slane %v483, 4
        %v491 = vadd.f32 %v483, %v490
        %v492 = vrot.slane %v491, 2
        %v493 = vadd.f32 %v491, %v492
        %v494 = vrot.slane %v493, 1
        %v495 = vadd.f32 %v493, %v494
        %v496 = vrcp.pop %v489
        %v497 = vmul.f32 %v481, %v496
        %v498 = vrcp.pop %v495
        %v499 = vmul.f32 %v483, %v498
        %500 = vst [vmem:[%s241] sm:$0xff] %v497
        %501 = vst [vmem:[%s241 + $0x8] sm:$0xff] %v499
        %vm502 = vcmask 64512
        %v504 = vsel %vm502, %v341, 0
        %v507 = vsel %vm502, %v346, 0
        %v510 = vsel %vm502, %v351, 0
        %v513 = vsel %vm502, %v356, 0
        %515 = vmatprep.subr.mxu0 %v499
        %516 = vmatpush1.msra.mxu0 %v497
        %517 = vmatprep.subr.mxu0 0.0
        %518 = vmatpush1.msra.mxu0 0.0
        %519 = vmatprep.subr.mxu0 0.0
        %520 = vmatpush1.msra.mxu0 0.0
        %521 = vmatprep.subr.mxu0 0.0
        %522 = vmatpush1.msra.mxu0 0.0
        %523 = vmatprep.subr.mxu0 0.0
        %524 = vmatpush1.msra.mxu0 0.0
        %525 = vmatprep.subr.mxu0 0.0
        %526 = vmatpush1.msra.mxu0 0.0
        %527 = vmatprep.subr.mxu0 0.0
        %528 = vmatpush1.msra.mxu0 0.0
        %529 = vmatprep.subr.mxu0 0.0
        %530 = vmatpush1.msra.mxu0 0.0
        %531 = vmatprep.subr.mxu0 0.0
        %532 = vmatpush1.msra.mxu0 0.0
        %533 = vmatprep.subr.mxu0 0.0
        %534 = vmatpush1.msra.mxu0 0.0
        %535 = vmatprep.subr.mxu0 0.0
        %536 = vmatpush1.msra.mxu0 0.0
        %537 = vmatprep.subr.mxu0 0.0
        %538 = vmatpush1.msra.mxu0 0.0
        %539 = vmatprep.subr.mxu0 0.0
        %540 = vmatpush1.msra.mxu0 0.0
        %541 = vmatprep.subr.mxu0 0.0
        %542 = vmatpush1.msra.mxu0 0.0
        %543 = vmatprep.subr.mxu0 0.0
        %544 = vmatpush1.msra.mxu0 0.0
        %545 = vmatprep.subr.mxu0 0.0
        %546 = vmatpush1.msra.mxu0 0.0
        %547 = vmatprep.subr.mxu0 0.0
        %548 = vmatpush1.msra.mxu0 0.0
        %549 = vmatprep.subr.mxu0 0.0
        %550 = vmatpush1.msra.mxu0 0.0
        %551 = vmatprep.subr.mxu0 0.0
        %552 = vmatpush1.msra.mxu0 0.0
        %553 = vmatprep.subr.mxu0 0.0
        %554 = vmatpush1.msra.mxu0 0.0
        %555 = vmatprep.subr.mxu0 0.0
        %556 = vmatpush1.msra.mxu0 0.0
        %557 = vmatprep.subr.mxu0 0.0
        %558 = vmatpush1.msra.mxu0 0.0
        %559 = vmatprep.subr.mxu0 0.0
        %560 = vmatpush1.msra.mxu0 0.0
        %561 = vmatprep.subr.mxu0 0.0
        %562 = vmatpush1.msra.mxu0 0.0
        %563 = vmatprep.subr.mxu0 0.0
        %564 = vmatpush1.msra.mxu0 0.0
        %565 = vmatprep.subr.mxu0 0.0
        %566 = vmatpush1.msra.mxu0 0.0
        %567 = vmatprep.subr.mxu0 0.0
        %568 = vmatpush1.msra.mxu0 0.0
        %569 = vmatprep.subr.mxu0 0.0
        %570 = vmatpush1.msra.mxu0 0.0
        %571 = vmatprep.subr.mxu0 0.0
        %572 = vmatpush1.msra.mxu0 0.0
        %573 = vmatprep.subr.mxu0 0.0
        %574 = vmatpush1.msra.mxu0 0.0
        %575 = vmatprep.subr.mxu0 0.0
        %576 = vmatpush1.msra.mxu0 0.0
        %577 = vmatprep.subr.mxu0 0.0
        %578 = vmatpush1.msra.mxu0 0.0
        %579 = vmatprep.mubr.f32.mxu0 0.0
        %580 = vmatmul.mubr.f32.gmra.mrb[0].mxu0 %v504
        %v581 = vpop.f32.mrb[0].mxu0
        %v582 = vadd.f32 0.0, %v581
        %v583 = vpop.f32.mrb[0].mxu0
        %v584 = vadd.f32 0.0, %v583
        %585 = vmatprep.mubr.f32.mxu0 0.0
        %586 = vmatmul.mubr.f32.gmra.mrb[0].mxu0 %v507
        %v587 = vpop.f32.mrb[0].mxu0
        %v588 = vadd.f32 0.0, %v587
        %v589 = vpop.f32.mrb[0].mxu0
        %v590 = vadd.f32 0.0, %v589
        %591 = vmatprep.mubr.f32.mxu0 0.0
        %592 = vmatmul.mubr.f32.gmra.mrb[0].mxu0 %v510
        %v593 = vpop.f32.mrb[0].mxu0
        %v594 = vadd.f32 0.0, %v593
        %v595 = vpop.f32.mrb[0].mxu0
        %v596 = vadd.f32 0.0, %v595
        %597 = vmatprep.mubr.f32.mxu0 0.0
        %598 = vmatmul.mubr.f32.gmra.mrb[0].mxu0 %v513
        %v599 = vpop.f32.mrb[0].mxu0
        %v600 = vadd.f32 0.0, %v599
        %v601 = vpop.f32.mrb[0].mxu0
        %v602 = vadd.f32 0.0, %v601
        %603 = vdwg.mxu0
        %604 = vst [vmem:[%s234] sm:$0xff] %v582
        %605 = vst [vmem:[%s234 + $0x8] sm:$0xff] %v584
        %606 = vst [vmem:[%s234 + $0x10] sm:$0xff] %v588
        %607 = vst [vmem:[%s234 + $0x18] sm:$0xff] %v590
        %608 = vst [vmem:[%s234 + $0x20] sm:$0xff] %v594
        %609 = vst [vmem:[%s234 + $0x28] sm:$0xff] %v596
        %610 = vst [vmem:[%s234 + $0x30] sm:$0xff] %v600
        %611 = vst [vmem:[%s234 + $0x38] sm:$0xff] %v602
        %s612 = sand.u32 %s106, 1
        %s613 = scalar_lea.sflag [#allocation4], %s612
        %s614 = sand.u32 %s106, 1
        %s615 = smul.addr %s614, 64
        %s616 = scalar_lea.vmem [#allocation5], %s615
        %s617 = sand.u32 %s132, 1
        %s618 = scalar_lea.sflag [#allocation7], %s617
        %s619 = sand.u32 %s132, 1
        %s620 = smul.addr %s619, 16
        %s621 = scalar_lea.vmem [#allocation6], %s620
        // Predicated region
        $region37: #{tpu_custom_call.1} parent=31 // pred_check
          %p622 = pneg %p116
        $region38: #{tpu_custom_call.1} parent=31 // pred_check_branch
          %624 = sbr.rel (%p622) target = $region40
        $region39: #{tpu_custom_call.1} parent=31 // pred_region
          %s626 = ssub.s32 1024, 1024
          %627 = vsyncadd %s613, %s626
          %s628 = smul.addr %s25, 8
          %s629 = smul.addr %s628, 128
          %s630 = scalar_lea.hbm %s3, %s629
          %s631 = sshll.u32 %s616, 4
          %s632 = int_to_ptr.vmem [resolvable:$true] %s631
          %637 = dma.vmem_to_hbm [thread:$0]  %s632, 1024, %s630, %s613, 256, 256, 16
        $region40: #{tpu_custom_call.1} parent=31 // pred_fallthru
          _
        // Predicated region
        $region41: #{tpu_custom_call.1} parent=31 // pred_check
          %p638 = pneg %p142
        $region42: #{tpu_custom_call.1} parent=31 // pred_check_branch
          %640 = sbr.rel (%p638) target = $region44
        $region43: #{tpu_custom_call.1} parent=31 // pred_region
          %s642 = ssub.s32 256, 256
          %643 = vsyncadd %s618, %s642
          %s644 = smul.addr %s25, 2
          %s645 = smul.addr %s644, 128
          %s646 = scalar_lea.hbm %s4, %s645
          %s648 = sshll.u32 %s621, 4
          %s649 = int_to_ptr.vmem [resolvable:$true] %s648
          %651 = dma.vmem_to_hbm [thread:$0]  %s649, 256, %s646, %s618
        $region44: #{tpu_custom_call.1} parent=31 // pred_fallthru
          _
      $region32: #{tpu_custom_call.1} parent=5 // pred_fallthru
        _
      %p652 = scmp.le.s32.totalorder 2, %s20
      // Predicated region
      $region45: #{tpu_custom_call.1} parent=5 // pred_check
        %p653 = pneg %p652
      $region46: #{tpu_custom_call.1} parent=5 // pred_check_branch
        %655 = sbr.rel (%p653) target = $region48
      $region47: #{tpu_custom_call.1} parent=5 // pred_region
        %s656 = ssub.s32 %s20, 2
        // Predicated region
        $region49: #{tpu_custom_call.1} parent=47 // pred_check
          %p657 = pneg %p122
        $region50: #{tpu_custom_call.1} parent=47 // pred_check_branch
          %659 = sbr.rel (%p657) target = $region52
        $region51: #{tpu_custom_call.1} parent=47 // pred_region
          %s660 = sand.u32 %s107, 1
          %s661 = scalar_lea.sflag [#allocation4], %s660
          %s662 = sand.u32 %s107, 1
          %s663 = smul.addr %s662, 64
          %s664 = scalar_lea.vmem [#allocation5], %s663
          %665 = dma.done %s661, 1024
        $region52: #{tpu_custom_call.1} parent=47 // pred_fallthru
          _
        // Predicated region
        $region53: #{tpu_custom_call.1} parent=47 // pred_check
          %p666 = pneg %p148
        $region54: #{tpu_custom_call.1} parent=47 // pred_check_branch
          %668 = sbr.rel (%p666) target = $region56
        $region55: #{tpu_custom_call.1} parent=47 // pred_region
          %s669 = sand.u32 %s133, 1
          %s670 = scalar_lea.sflag [#allocation7], %s669
          %s671 = sand.u32 %s133, 1
          %s672 = smul.addr %s671, 16
          %s673 = scalar_lea.vmem [#allocation6], %s672
          %674 = dma.done %s670, 256
        $region56: #{tpu_custom_call.1} parent=47 // pred_fallthru
          _
      $region48: #{tpu_custom_call.1} parent=5 // pred_fallthru
        _
    $region6: #{tpu_custom_call.1} parent=1 // loop_footer
      %s24 = sadd.s32 1, %s20
    $region7: #{tpu_custom_call.1} parent=1 // loop_footer_branch
      %19 = sbr.rel target = $region3
    $region8: #{tpu_custom_call.1} parent=1 // loop_exit
      _
    %675 = vsyncpa [#allocation3], 1
    %s676 = scalar_lea.sflag [#allocation3], 1
    %677 = vsyncpa %s676, 1
    %678 = vsyncpa [#allocation4], 1
    %s679 = scalar_lea.sflag [#allocation4], 1
    %680 = vsyncpa %s679, 1
    %681 = vsyncpa [#allocation7], 1
    %s682 = scalar_lea.sflag [#allocation7], 1
    %683 = vsyncpa %s682, 1

</llo_original>
